<compile_context>
chip_gen: v7x
topology: tpu7x:2x2x1
jax: 0.10.0
libtpu: 0.0.40
codegen_flags: <defaults>
</compile_context>

<pallas_src>
import functools

import jax
import jax.numpy as jnp
from jax.experimental import pallas as pl
from jax.experimental.pallas import tpu as pltpu

LANES = 128
MAX_BLOCK_ROWS = 1024   # 1024 x 128 f32 = 512 KiB/block; x2 inputs x2 buffers = 2 MiB VMEM
MAX_CORES = 2           # megacore split on v7x; sequential (and harmless) elsewhere


def _round_up(x: int, m: int) -> int:
    return ((x + m - 1) // m) * m


def _bce_loss_kernel(x_ref, y_ref, out_ref, *, total_count, block_rows, needs_mask):
    c = pl.program_id(0)          # core / stream-partition axis ("parallel")
    i = pl.program_id(1)          # reduction axis ("arbitrary")

    @pl.when(i == 0)
    def _():
        out_ref[...] = jnp.zeros_like(out_ref)

    x = x_ref[...].astype(jnp.float32)
    y = y_ref[...].astype(jnp.float32)
    # Stable BCE-with-logits.
    loss = jnp.maximum(x, 0.0) - x * y + jnp.log1p(jnp.exp(-jnp.abs(x)))

    if needs_mask:
        # Zero out padded elements (padding only exists at the tail of the slab).
        block_elems = block_rows * LANES
        base = (c * pl.num_programs(1) + i) * block_elems
        row = jax.lax.broadcasted_iota(jnp.int32, (block_rows, LANES), 0)
        lane = jax.lax.broadcasted_iota(jnp.int32, (block_rows, LANES), 1)
        mask = (base + row * LANES + lane) < total_count
        loss = jnp.where(mask, loss, 0.0)

    # Collapse the block to one (8, 128) vreg-shaped partial via cheap VPU adds
    # and accumulate into the resident output block.  No XLU reduce per step.
    out_ref[...] += loss.reshape(block_rows // 8, 8, LANES).sum(axis=0)


def bce_with_logits_mean(logits: jax.Array, targets: jax.Array) -> jax.Array:
    """Mean BCE-with-logits over all elements. Inputs: same shape (e.g. NCHW)."""
    assert logits.shape == targets.shape
    total = logits.size

    rows = pl.cdiv(total, LANES)
    block_rows = min(MAX_BLOCK_ROWS, _round_up(rows, 8))
    num_blocks = pl.cdiv(rows, block_rows)
    num_cores = MAX_CORES if num_blocks >= MAX_CORES else 1
    blocks_per_core = pl.cdiv(num_blocks, num_cores)
    padded_rows = num_cores * blocks_per_core * block_rows
    padded_total = padded_rows * LANES
    needs_mask = padded_total != total

    # Feed inputs in their native dtype (bf16 halves HBM traffic); cast in-kernel.
    x = logits.reshape(-1)
    y = targets.reshape(-1)
    if needs_mask:
        pad = padded_total - total
        x = jnp.pad(x, (0, pad))
        y = jnp.pad(y, (0, pad))
    x2d = x.reshape(padded_rows, LANES)
    y2d = y.reshape(padded_rows, LANES)

    kernel = functools.partial(
        _bce_loss_kernel,
        total_count=total,
        block_rows=block_rows,
        needs_mask=needs_mask,
    )

    in_map = lambda c, i: (c * blocks_per_core + i, 0)

    partials = pl.pallas_call(
        kernel,
        out_shape=jax.ShapeDtypeStruct((num_cores * 8, LANES), jnp.float32),
        grid_spec=pltpu.PrefetchScalarGridSpec(
            num_scalar_prefetch=0,
            grid=(num_cores, blocks_per_core),
            in_specs=[
                pl.BlockSpec((block_rows, LANES), in_map),
                pl.BlockSpec((block_rows, LANES), in_map),
            ],
            # Each core owns one resident (8, 128) accumulator block.
            out_specs=pl.BlockSpec((8, LANES), lambda c, i: (c, 0)),
        ),
        compiler_params=pltpu.CompilerParams(
            dimension_semantics=("parallel", "arbitrary"),
        ),
    )(x2d, y2d)

    # Single cross-lane reduction + normalization, once, outside the kernel.
    return jnp.sum(partials) / jnp.float32(total)


def bce_loss_forward(outputs, annotation, pos_weight=None):
    """Mirror of BCELoss.forward (default config: pos_weight=None, mean reduction)."""
    def _one(output):
        l = bce_with_logits_mean(output, annotation)
        if pos_weight is not None:
            # torch.mean(pos_weight_tensor * scalar_loss) == mean(pos_weight) * loss
            l = jnp.mean(jnp.asarray(pos_weight, dtype=jnp.float32)) * l
        return l

    if isinstance(outputs, (list, tuple)):
        # TODO(synk): the list branch needs F.interpolate (spatial resize) to the
        # annotation size; the permute([0,3,2,1]) is a no-op under the elementwise
        # mean, so only resize is missing here (outputs must already match).
        loss = jnp.float32(0.0)
        for output in outputs:
            assert output.shape[-2:] == annotation.shape[-2:], (
                "list path without matching spatial size requires F.interpolate")
            loss = loss + _one(output)
        return loss
    return _one(outputs)


if __name__ == "__main__":
    key = jax.random.PRNGKey(0)
    k1, k2 = jax.random.split(key)

    N, C, H, W = 2, 4, 16, 16  # NCHW, matching PyTorch conv-output convention
    logits = jax.random.normal(k1, (N, C, H, W), dtype=jnp.float32)
    targets = jax.random.bernoulli(k2, 0.5, (N, C, H, W)).astype(jnp.float32)

    loss = bce_loss_forward(logits, targets)
    loss = jax.block_until_ready(loss)

    # pure-JAX reference check
    ref = jnp.mean(
        jnp.maximum(logits, 0.0)
        - logits * targets
        + jnp.log1p(jnp.exp(-jnp.abs(logits)))
    )
    assert jnp.allclose(loss, ref, rtol=1e-5, atol=1e-6), (loss, ref)

    # also exercise a non-128-multiple / masked-path shape for robustness
    M = 5 * 3 * 7 * 11  # 1155 elements -> padding + in-kernel mask
    lg2 = jax.random.normal(k1, (5, 3, 7, 11), dtype=jnp.bfloat16)
    tg2 = jax.random.bernoulli(k2, 0.5, (5, 3, 7, 11)).astype(jnp.bfloat16)
    loss2 = jax.block_until_ready(bce_with_logits_mean(lg2, tg2))
    lf, tf = lg2.astype(jnp.float32), tg2.astype(jnp.float32)
    ref2 = jnp.mean(jnp.maximum(lf, 0.0) - lf * tf + jnp.log1p(jnp.exp(-jnp.abs(lf))))
    assert jnp.allclose(loss2, ref2, rtol=1e-3, atol=1e-3), (loss2, ref2)

    print("KERNEL_OK")
</pallas_src>

<mosaic_0001>
module attributes {stable_mosaic.version = 11 : i64} {
  func.func @_bce_loss_kernel(%arg0: i32, %arg1: i32, %arg2: memref<16x128xf32, #tpu.memory_space<vmem>>, %arg3: memref<16x128xf32, #tpu.memory_space<vmem>>, %arg4: memref<8x128xf32, #tpu.memory_space<vmem>>) attributes {dimension_semantics = [#tpu.dimension_semantics<parallel>, #tpu.dimension_semantics<arbitrary>], iteration_bounds = array<i64: 1, 1>, scalar_prefetch = 0 : i64, scratch_operands = 0 : i64, tpu.core_type = #tpu.core_type<tc>, window_params = [{transform_indices = @transform_0, window_bounds = array<i64: 16, 128>}, {transform_indices = @transform_1, window_bounds = array<i64: 16, 128>}, {transform_indices = @transform_2, window_bounds = array<i64: 8, 128>}]} {
    %c0_i32 = arith.constant 0 : i32
    %0 = arith.cmpi eq, %arg1, %c0_i32 : i32
    %1 = arith.extui %0 : i1 to i32
    %c0_i32_0 = arith.constant 0 : i32
    %2 = arith.cmpi ne, %1, %c0_i32_0 : i32
    scf.if %2 {
      %cst_10 = arith.constant 0.000000e+00 : f32
      %20 = vector.broadcast %cst_10 : f32 to vector<8x128xf32>
      %c0_11 = arith.constant 0 : index
      %c0_12 = arith.constant 0 : index
      %21 = vector.load %arg4[%c0_11, %c0_12] : memref<8x128xf32, #tpu.memory_space<vmem>>, vector<8x128xf32>
      tpu.vector_store %arg4[%c0_11, %c0_12], %20 {strides = array<i32>} : memref<8x128xf32, #tpu.memory_space<vmem>>, vector<8x128xf32>,
    } else {
    }
    %c0 = arith.constant 0 : index
    %c0_1 = arith.constant 0 : index
    %3 = vector.load %arg2[%c0, %c0_1] : memref<16x128xf32, #tpu.memory_space<vmem>>, vector<16x128xf32>
    %c0_2 = arith.constant 0 : index
    %c0_3 = arith.constant 0 : index
    %4 = vector.load %arg3[%c0_2, %c0_3] : memref<16x128xf32, #tpu.memory_space<vmem>>, vector<16x128xf32>
    %cst = arith.constant 0.000000e+00 : f32
    %5 = vector.broadcast %cst : f32 to vector<16x128xf32>
    %6 = arith.maximumf %3, %5 : vector<16x128xf32>
    %7 = arith.mulf %3, %4 : vector<16x128xf32>
    %8 = arith.subf %6, %7 : vector<16x128xf32>
    %9 = math.absf %3 : vector<16x128xf32>
    %cst_4 = arith.constant 0.000000e+00 : f32
    %10 = vector.broadcast %cst_4 : f32 to vector<16x128xf32>
    %11 = arith.subf %10, %9 : vector<16x128xf32>
    %12 = math.exp %11 : vector<16x128xf32>
    %13 = math.log1p %12 : vector<16x128xf32>
    %14 = arith.addf %8, %13 : vector<16x128xf32>
    %c0_5 = arith.constant 0 : index
    %c0_6 = arith.constant 0 : index
    %15 = vector.load %arg4[%c0_5, %c0_6] : memref<8x128xf32, #tpu.memory_space<vmem>>, vector<8x128xf32>
    %16 = vector.shape_cast %14 : vector<16x128xf32> to vector<2x8x128xf32>
    %cst_7 = arith.constant dense<0.000000e+00> : vector<8x128xf32>
    %17 = vector.multi_reduction <add>, %16, %cst_7 [0] : vector<2x8x128xf32> to vector<8x128xf32>
    %18 = arith.addf %15, %17 : vector<8x128xf32>
    %c0_8 = arith.constant 0 : index
    %c0_9 = arith.constant 0 : index
    %19 = vector.load %arg4[%c0_8, %c0_9] : memref<8x128xf32, #tpu.memory_space<vmem>>, vector<8x128xf32>
    tpu.vector_store %arg4[%c0_8, %c0_9], %18 {strides = array<i32>} : memref<8x128xf32, #tpu.memory_space<vmem>>, vector<8x128xf32>,
    return
  }
  func.func @transform_0(%arg0: i32, %arg1: i32) -> (i32, i32) {
    %c1_i32 = arith.constant 1 : i32
    %0 = arith.muli %arg0, %c1_i32 : i32
    %1 = arith.addi %0, %arg1 : i32
    %c0_i32 = arith.constant 0 : i32
    %c0_i32_0 = arith.constant 0 : i32
    return %1, %c0_i32 : i32, i32
  }
  func.func @transform_1(%arg0: i32, %arg1: i32) -> (i32, i32) {
    %c1_i32 = arith.constant 1 : i32
    %0 = arith.muli %arg0, %c1_i32 : i32
    %1 = arith.addi %0, %arg1 : i32
    %c0_i32 = arith.constant 0 : i32
    %c0_i32_0 = arith.constant 0 : i32
    return %1, %c0_i32 : i32, i32
  }
  func.func @transform_2(%arg0: i32, %arg1: i32) -> (i32, i32) {
    %c0_i32 = arith.constant 0 : i32
    %c0_i32_0 = arith.constant 0 : i32
    return %arg0, %c0_i32 : i32, i32
  }
}

</mosaic_0001>

<llo_original>
// kernel: tpu_custom_call.1
$region0: #{tpu_custom_call.1}
  #allocation0 [shape = 'u32[]', space=smem, size = 0x4, offset = 0x4, fixed_abs, tag = 'smem constant byte address 0x4 - core index']
  #allocation1 [shape = 'u32[144,128]{1,0:T(1,128)}', space=vmem, size = 0x12000, scoped, tag = 'internal scratch']
  %s0 = inlined_call_operand.hbm [shape: f32[16,128], index: 0, kind: input, shape index: {}]
  %s1 = inlined_call_operand.hbm [shape: f32[16,128], index: 1, kind: input, shape index: {}]
  %s2 = inlined_call_operand.hbm [shape: f32[8,128], index: 2, kind: output, shape index: {}]
  %s3 = sld [smem:[#allocation0]]
  $region30: #{tpu_custom_call.1} parent=0
    _
  %s5 = ssub.s32 1, %s3
  %s6 = scalar_select 0, %s5, %s3
  $region1: #{tpu_custom_call.1} parent=0
    #allocation2 [shape = 'u8[8192]{0}', space=vmem, size = 0x2000, scoped, tag = 'input window, operand 0, single buffered']
    #allocation3 [shape = 's32[1]{0}', space=sflag, size = 0x4, scoped, tag = 'scoped memory for tpu_custom_call.1']
    #allocation4 [shape = 's32[1]{0}', space=sflag, size = 0x4, scoped, tag = 'scoped memory for tpu_custom_call.1']
    #allocation5 [shape = 'u8[8192]{0}', space=vmem, size = 0x2000, scoped, tag = 'input window, operand 1, single buffered']
    #allocation6 [shape = 's32[1]{0}', space=sflag, size = 0x4, scoped, tag = 'scoped memory for tpu_custom_call.1']
    #allocation7 [shape = 'u8[4096]{0}', space=vmem, size = 0x1000, scoped, tag = 'output window, operand 0, single buffered']
    %7 = vsyncpa [#allocation3], 0
    %8 = vsyncpa [#allocation6], 0
    %9 = vsyncpa [#allocation4], 0
    // Predicated region
    $region2: #{tpu_custom_call.1} parent=1 // pred_check
      _
    $region3: #{tpu_custom_call.1} parent=1 // pred_check_branch
      %11 = sbr.rel (0) target = $region5
    $region4: #{tpu_custom_call.1} parent=1 // pred_region
      %s12 = sadd.s32 0, 0
      %s13 = smul.u32 2, %s12
      %s15 = ssub.s32 256, 256
      %16 = vsyncadd [#allocation3], %s15
      %s17 = smul.addr %s13, 128
      %s18 = scalar_lea.hbm %s0, %s17
      %s19 = sshll.u32 [#allocation2], 4
      %s20 = int_to_ptr.vmem [resolvable:$true] %s19
      %25 = dma.hbm_to_vmem [thread:$0]  %s18, 256, %s20, [#allocation3], 128, 128, 8
    $region5: #{tpu_custom_call.1} parent=1 // pred_fallthru
      _
    // Predicated region
    $region6: #{tpu_custom_call.1} parent=1 // pred_check
      _
    $region7: #{tpu_custom_call.1} parent=1 // pred_check_branch
      %27 = sbr.rel (0) target = $region9
    $region8: #{tpu_custom_call.1} parent=1 // pred_region
      %s28 = sadd.s32 0, 0
      %s29 = smul.u32 2, %s28
      %s31 = ssub.s32 256, 256
      %32 = vsyncadd [#allocation6], %s31
      %s33 = smul.addr %s29, 128
      %s34 = scalar_lea.hbm %s1, %s33
      %s35 = sshll.u32 [#allocation5], 4
      %s36 = int_to_ptr.vmem [resolvable:$true] %s35
      %41 = dma.hbm_to_vmem [thread:$0]  %s34, 256, %s36, [#allocation6], 128, 128, 8
    $region9: #{tpu_custom_call.1} parent=1 // pred_fallthru
      _
    // Predicated region
    $region10: #{tpu_custom_call.1} parent=1 // pred_check
      _
    $region11: #{tpu_custom_call.1} parent=1 // pred_check_branch
      %43 = sbr.rel (0) target = $region13
    $region12: #{tpu_custom_call.1} parent=1 // pred_region
      %44 = dma.done [#allocation3], 256
    $region13: #{tpu_custom_call.1} parent=1 // pred_fallthru
      _
    // Predicated region
    $region14: #{tpu_custom_call.1} parent=1 // pred_check
      _
    $region15: #{tpu_custom_call.1} parent=1 // pred_check_branch
      %46 = sbr.rel (0) target = $region17
    $region16: #{tpu_custom_call.1} parent=1 // pred_region
      %47 = dma.done [#allocation6], 256
    $region17: #{tpu_custom_call.1} parent=1 // pred_fallthru
      _
    %s48 = sadd.s32 0, 0
    %s49 = smul.u32 2, %s48
    %s50 = sadd.s32 0, 0
    %s51 = smul.u32 2, %s50
    %p52 = scmp.eq.s32.totalorder 0, 0
    // Predicated region
    $region18: #{tpu_custom_call.1} parent=1 // pred_check
      %p53 = pneg %p52
    $region19: #{tpu_custom_call.1} parent=1 // pred_check_branch
      %55 = sbr.rel (%p53) target = $region21
    $region20: #{tpu_custom_call.1} parent=1 // pred_region
      %56 = vst [vmem:[#allocation7] sm:$0xff] 0.0
    $region21: #{tpu_custom_call.1} parent=1 // pred_fallthru
      _
    %v57 = vld [vmem:[#allocation2] sm:$0xff]
    %v58 = vld [vmem:[#allocation2 + $0x8] sm:$0xff]
    %v59 = vld [vmem:[#allocation5] sm:$0xff]
    %v60 = vld [vmem:[#allocation5 + $0x8] sm:$0xff]
    %v61 = vmax.f32 %v57, 0.0
    %v62 = vmax.f32 %v58, 0.0
    %v63 = vmul.f32 %v57, %v59
    %v64 = vmul.f32 %v58, %v60
    %v65 = vsub.f32 %v61, %v63
    %v66 = vsub.f32 %v62, %v64
    %v67 = vand.u32 2147483647, %v57
    %v68 = vand.u32 2147483647, %v58
    %v69 = vsub.f32 0.0, %v67
    %v70 = vsub.f32 0.0, %v68
    %v71 = vmul.f32 %v69, 1.442695
    %v72 = vpow.pop %v71
    %v73 = vmul.f32 %v70, 1.442695
    %v74 = vpow.pop %v73
    %v75 = vadd.f32 %v72, 1.0
    %v76 = vlog2.pop %v75
    %v77 = vmul.f32 %v76, 0.6931472
    %v78 = vmul.f32 -0.5, %v72
    %v79 = vadd.f32 %v78, 1.0
    %v80 = vmul.f32 %v79, %v72
    %v81 = vand.u32 2147483647, %v72
    %vm82 = vcmp.lt.f32.partialorder %v81, 0.0004427343
    %v83 = vsel %vm82, %v80, %v77
    %v84 = vadd.f32 %v74, 1.0
    %v85 = vlog2.pop %v84
    %v86 = vmul.f32 %v85, 0.6931472
    %v87 = vmul.f32 -0.5, %v74
    %v88 = vadd.f32 %v87, 1.0
    %v89 = vmul.f32 %v88, %v74
    %v90 = vand.u32 2147483647, %v74
    %vm91 = vcmp.lt.f32.partialorder %v90, 0.0004427343
    %v92 = vsel %vm91, %v89, %v86
    %v93 = vadd.f32 %v65, %v83
    %v94 = vadd.f32 %v66, %v92
    %v95 = vld [vmem:[#allocation7] sm:$0xff]
    %v96 = vadd.f32 %v93, %v94
    %v97 = vadd.f32 %v95, %v96
    %98 = vst [vmem:[#allocation7] sm:$0xff] %v97
    // Predicated region
    $region22: #{tpu_custom_call.1} parent=1 // pred_check
      _
    $region23: #{tpu_custom_call.1} parent=1 // pred_check_branch
      %100 = sbr.rel (0) target = $region25
    $region24: #{tpu_custom_call.1} parent=1 // pred_region
      %s102 = ssub.s32 128, 128
      %103 = vsyncadd [#allocation4], %s102
      %s105 = sshll.u32 [#allocation7], 4
      %s106 = int_to_ptr.vmem [resolvable:$true] %s105
      %108 = dma.vmem_to_hbm [thread:$0]  %s106, 128, %s2, [#allocation4]
    $region25: #{tpu_custom_call.1} parent=1 // pred_fallthru
      _
    // Predicated region
    $region26: #{tpu_custom_call.1} parent=1 // pred_check
      _
    $region27: #{tpu_custom_call.1} parent=1 // pred_check_branch
      %110 = sbr.rel (0) target = $region29
    $region28: #{tpu_custom_call.1} parent=1 // pred_region
      %111 = dma.done [#allocation4], 128
    $region29: #{tpu_custom_call.1} parent=1 // pred_fallthru
      _
    %112 = vsyncpa [#allocation3], 1
    %113 = vsyncpa [#allocation6], 1
    %114 = vsyncpa [#allocation4], 1

</llo_original>
